<compile_context>
chip_gen: v5e
topology: v5e:2x2
jax: 0.10.0
libtpu: 0.0.40
codegen_flags: <defaults>
</compile_context>

<pallas_src>
import jax
import jax.numpy as jnp
from jax.experimental import pallas as pl
from jax.experimental.pallas import tpu as pltpu


# ---------------------------------------------------------------------------
# One-time kernel: GCN spatial encoder + batch-invariant half of the fusion
# Linear (everything that does not depend on x_seq).
# ---------------------------------------------------------------------------
def _spatial_precompute_kernel(adj_ref, emb_ref, g1w_ref, g1b_ref,
                               g2w_ref, g2b_ref, wfs_ref, ball_ref, spat_ref):
    adj = adj_ref[...]                                           # load A_hat once, reuse
    xw = jnp.dot(emb_ref[...], g1w_ref[...], preferred_element_type=jnp.float32)
    h = jnp.maximum(
        jnp.dot(adj, xw, preferred_element_type=jnp.float32) + g1b_ref[...], 0.0)
    hw = jnp.dot(h, g2w_ref[...], preferred_element_type=jnp.float32)
    s = jnp.maximum(
        jnp.dot(adj, hw, preferred_element_type=jnp.float32) + g2b_ref[...], 0.0)
    # spat_f = spatial @ Wf_s + (bt @ Wf_t + bf)
    spat_ref[...] = (jnp.dot(s, wfs_ref[...], preferred_element_type=jnp.float32)
                     + ball_ref[...])


# ---------------------------------------------------------------------------
# Per-call kernel: x_last @ Wc  (+ cached spatial slab, broadcast over batch)
#                  -> ReLU -> Linear(H, H//2) -> ReLU -> output head.
# ---------------------------------------------------------------------------
def _fusion_decoder_kernel(x_ref, slabh_ref, slabd_ref, tail_ref, out_ref):
    B, N, F = x_ref.shape                      # time dim already squeezed to t = T-1
    H = slabh_ref.shape[1]
    Hh = slabd_ref.shape[1]
    O = out_ref.shape[-1]

    # per-batch half of the fusion Linear (temporal_proj folded into Wc)
    x2 = x_ref[...].reshape(B * N, F)                          # lanes fixed, N % 8 == 0
    wc = slabh_ref[0:F, :]                                     # (F, H)
    spat = slabh_ref[F:F + N, :]                               # (N, H) cached, incl. biases
    xp = jnp.dot(x2, wc, preferred_element_type=jnp.float32)   # (B*N, H)

    # broadcast-add of the batch-invariant spatial slab (single VPU add, O(1) in B)
    fused = xp.reshape(B, N, H) + spat[None]
    d = jnp.maximum(fused, 0.0).reshape(B * N, H)

    # decoder: Linear(H, H//2) -> ReLU
    wd1 = slabd_ref[0:H, :]                                    # (H, Hh)
    bd1 = slabd_ref[H:H + 1, :]                                # (1, Hh)
    d = jnp.maximum(
        jnp.dot(d, wd1, preferred_element_type=jnp.float32) + bd1, 0.0)

    # output head
    if O == 1:
        # VPU multiply + lane reduction: avoids an MXU pass with a 1-lane result.
        w2 = tail_ref[0:1, :]                                  # (1, Hh) = Wd2^T
        b2 = tail_ref[1:2, 0:1]                                # (1, 1)  = bd2
        out = jnp.sum(d * w2, axis=-1, keepdims=True) + b2
    else:
        w2 = tail_ref[0:Hh, :]                                 # (Hh, O)
        b2 = tail_ref[Hh:Hh + 1, :]                            # (1, O)
        out = jnp.dot(d, w2, preferred_element_type=jnp.float32) + b2
    out_ref[...] = out


# ---------------------------------------------------------------------------
# PyG-style symmetric normalization of the dense adjacency (one-time, XLA).
# ---------------------------------------------------------------------------
def gcn_norm_dense(edge_index, edge_weight, num_nodes):
    src, dst = edge_index[0], edge_index[1]
    if edge_weight is None:
        edge_weight = jnp.ones(src.shape[0], jnp.float32)
    a = jnp.zeros((num_nodes, num_nodes), jnp.float32).at[dst, src].add(edge_weight)
    a = a + jnp.eye(num_nodes, dtype=jnp.float32)              # add self loops (weight 1)
    deg = a.sum(axis=1)
    dis = jnp.where(deg > 0, jax.lax.rsqrt(deg), 0.0)
    return dis[:, None] * a * dis[None, :]


def precompute_static(params, edge_index, edge_weight, num_nodes):
    """One-time fold of everything that does not depend on x_seq.

    Cache the returned dict across forward calls for a static graph: it holds
    the GCN spatial branch output (computed via a one-time Pallas call) plus
    the folded temporal/fusion/decoder weights packed into 3 DMA slabs.
    """
    N = num_nodes
    H = params["wt"].shape[1]
    Hh = params["wd1"].shape[1]
    O = params["wd2"].shape[1]
    vmem = pltpu.MemorySpace.VMEM

    a_hat = gcn_norm_dense(edge_index, edge_weight, N)

    # temporal_proj folded into the fusion Linear's temporal half
    wc = params["wt"] @ params["wf_t"]                          # (F, H)
    ball = params["bt"] @ params["wf_t"] + params["bf"]         # (1, H)

    spat = pl.pallas_call(
        _spatial_precompute_kernel,
        in_specs=[pl.BlockSpec(memory_space=vmem)] * 8,
        out_specs=pl.BlockSpec(memory_space=vmem),
        out_shape=jax.ShapeDtypeStruct((N, H), jnp.float32),
    )(a_hat, params["emb"], params["g1_w"], params["g1_b"],
      params["g2_w"], params["g2_b"], params["wf_s"], ball)

    slab_h = jnp.concatenate([wc, spat], axis=0)                        # (F+N, H)
    slab_d = jnp.concatenate([params["wd1"], params["bd1"]], axis=0)    # (H+1, Hh)
    if O == 1:
        tail = jnp.concatenate(
            [params["wd2"].T,
             jnp.full((1, Hh), params["bd2"][0, 0], jnp.float32)], axis=0)   # (2, Hh)
    else:
        tail = jnp.concatenate([params["wd2"], params["bd2"]], axis=0)       # (Hh+1, O)

    return {"slab_h": slab_h, "slab_d": slab_d, "tail": tail,
            "hidden": H, "out_dim": O}


def gcn_fusion_forward(static, x_seq):
    B, T, N, F = x_seq.shape
    H = static["hidden"]
    O = static["out_dim"]
    Hh = static["slab_d"].shape[1]
    vmem = pltpu.MemorySpace.VMEM

    out2d = pl.pallas_call(
        _fusion_decoder_kernel,
        grid=(1,),
        in_specs=[
            # x_seq fed directly; squeezed time dim selects t = T-1 (no wrapper copy)
            pl.BlockSpec((B, None, N, F), lambda i: (0, T - 1, 0, 0),
                         memory_space=vmem),
            pl.BlockSpec((F + N, H), lambda i: (0, 0), memory_space=vmem),
            pl.BlockSpec((H + 1, Hh), lambda i: (0, 0), memory_space=vmem),
            pl.BlockSpec(static["tail"].shape, lambda i: (0, 0), memory_space=vmem),
        ],
        out_specs=pl.BlockSpec((B * N, O), lambda i: (0, 0), memory_space=vmem),
        out_shape=jax.ShapeDtypeStruct((B * N, O), jnp.float32),
        compiler_params=pltpu.CompilerParams(
            dimension_semantics=("arbitrary",)),
    )(x_seq, static["slab_h"], static["slab_d"], static["tail"])

    return out2d.reshape(B, N, O)


# ---------------------------------------------------------------------------
# Pure-JAX reference (mirrors the PyTorch forward in eval mode).
# ---------------------------------------------------------------------------
def reference_forward(params, x_seq, edge_index, edge_weight=None):
    B, T, N, F = x_seq.shape
    a_hat = gcn_norm_dense(edge_index, edge_weight, N)
    x_last = x_seq[:, -1, :, :]                                        # (B, N, F)
    xp = x_last @ params["wt"] + params["bt"]                          # temporal_proj
    h = jnp.maximum(a_hat @ (params["emb"] @ params["g1_w"]) + params["g1_b"], 0.0)
    spatial = jnp.maximum(a_hat @ (h @ params["g2_w"]) + params["g2_b"], 0.0)
    fused = xp @ params["wf_t"] + spatial[None] @ params["wf_s"] + params["bf"]
    d = jnp.maximum(fused, 0.0)
    d = jnp.maximum(d @ params["wd1"] + params["bd1"], 0.0)
    return d @ params["wd2"] + params["bd2"]


def init_params(key, in_channels, graph_feat_dim, hidden_dim, out_channels, num_nodes):
    ks = jax.random.split(key, 14)
    s = 0.1
    H, G, F, O, N = hidden_dim, graph_feat_dim, in_channels, out_channels, num_nodes
    return {
        "emb":  s * jax.random.normal(ks[0], (N, G), jnp.float32),
        "g1_w": s * jax.random.normal(ks[1], (G, H), jnp.float32),
        "g1_b": s * jax.random.normal(ks[2], (1, H), jnp.float32),
        "g2_w": s * jax.random.normal(ks[3], (H, H), jnp.float32),
        "g2_b": s * jax.random.normal(ks[4], (1, H), jnp.float32),
        "wt":   s * jax.random.normal(ks[5], (F, H), jnp.float32),
        "bt":   s * jax.random.normal(ks[6], (1, H), jnp.float32),
        "wf_t": s * jax.random.normal(ks[7], (H, H), jnp.float32),   # fusion W[:, :H].T
        "wf_s": s * jax.random.normal(ks[8], (H, H), jnp.float32),   # fusion W[:, H:].T
        "bf":   s * jax.random.normal(ks[9], (1, H), jnp.float32),
        "wd1":  s * jax.random.normal(ks[10], (H, H // 2), jnp.float32),
        "bd1":  s * jax.random.normal(ks[11], (1, H // 2), jnp.float32),
        "wd2":  s * jax.random.normal(ks[12], (H // 2, O), jnp.float32),
        "bd2":  s * jax.random.normal(ks[13], (1, O), jnp.float32),
    }


if __name__ == "__main__":
    B, T, N = 2, 4, 16                    # N % 8 == 0 -> clean sublane packing
    in_channels, graph_feat_dim, hidden_dim, out_channels = 8, 8, 32, 1

    key = jax.random.PRNGKey(0)
    k_x, k_p = jax.random.split(key)

    x_seq = jax.random.normal(k_x, (B, T, N, in_channels), jnp.float32)

    # bidirectional ring graph over N nodes
    idx = jnp.arange(N, dtype=jnp.int32)
    src = jnp.concatenate([idx, idx])
    dst = jnp.concatenate([(idx + 1) % N, (idx - 1) % N])
    edge_index = jnp.stack([src, dst], axis=0)

    params = init_params(k_p, in_channels, graph_feat_dim, hidden_dim,
                         out_channels, N)

    # One-time fold: graph normalization, GCN spatial branch, weight packing.
    static = precompute_static(params, edge_index, None, N)   # cache across calls
    jax.block_until_ready(static["slab_h"])

    out = gcn_fusion_forward(static, x_seq)
    jax.block_until_ready(out)
    assert out.shape == (B, N, out_channels), out.shape

    ref = reference_forward(params, x_seq, edge_index, None)
    err = float(jnp.max(jnp.abs(out - ref)))
    assert jnp.allclose(out, ref, atol=1e-4, rtol=1e-4), err

    print("KERNEL_OK")
</pallas_src>

<mosaic_0001>
module attributes {stable_mosaic.version = 11 : i64} {
  func.func @_spatial_precompute_kernel(%arg0: memref<16x16xf32, #tpu.memory_space<vmem>>, %arg1: memref<16x8xf32, #tpu.memory_space<vmem>>, %arg2: memref<8x32xf32, #tpu.memory_space<vmem>>, %arg3: memref<1x32xf32, #tpu.memory_space<vmem>>, %arg4: memref<32x32xf32, #tpu.memory_space<vmem>>, %arg5: memref<1x32xf32, #tpu.memory_space<vmem>>, %arg6: memref<32x32xf32, #tpu.memory_space<vmem>>, %arg7: memref<1x32xf32, #tpu.memory_space<vmem>>, %arg8: memref<16x32xf32, #tpu.memory_space<vmem>>) attributes {dimension_semantics = [], scalar_prefetch = 0 : i64, scratch_operands = 0 : i64, tpu.core_type = #tpu.core_type<tc>} {
    %c0 = arith.constant 0 : index
    %c0_0 = arith.constant 0 : index
    %0 = vector.load %arg0[%c0, %c0_0] : memref<16x16xf32, #tpu.memory_space<vmem>>, vector<16x16xf32>
    %c0_1 = arith.constant 0 : index
    %c0_2 = arith.constant 0 : index
    %1 = vector.load %arg1[%c0_1, %c0_2] : memref<16x8xf32, #tpu.memory_space<vmem>>, vector<16x8xf32>
    %c0_3 = arith.constant 0 : index
    %c0_4 = arith.constant 0 : index
    %2 = vector.load %arg2[%c0_3, %c0_4] : memref<8x32xf32, #tpu.memory_space<vmem>>, vector<8x32xf32>
    %cst = arith.constant dense<0.000000e+00> : vector<16x32xf32>
    %3 = tpu.matmul %1, %2, %cst {dimension_numbers = #tpu.dot_dimension_numbers<[1], [0], [0], [1], [0, 0, 1, 1], [], []>} : vector<16x8xf32>, vector<8x32xf32>, vector<16x32xf32> -> vector<16x32xf32>
    %cst_5 = arith.constant dense<0.000000e+00> : vector<16x32xf32>
    %4 = tpu.matmul %0, %3, %cst_5 {dimension_numbers = #tpu.dot_dimension_numbers<[1], [0], [0], [1], [0, 0, 1, 1], [], []>} : vector<16x16xf32>, vector<16x32xf32>, vector<16x32xf32> -> vector<16x32xf32>
    %c0_6 = arith.constant 0 : index
    %c0_7 = arith.constant 0 : index
    %5 = vector.load %arg3[%c0_6, %c0_7] : memref<1x32xf32, #tpu.memory_space<vmem>>, vector<1x32xf32>
    %6 = vector.broadcast %5 : vector<1x32xf32> to vector<16x32xf32>
    %7 = arith.addf %4, %6 : vector<16x32xf32>
    %cst_8 = arith.constant 0.000000e+00 : f32
    %8 = vector.broadcast %cst_8 : f32 to vector<16x32xf32>
    %9 = arith.maximumf %7, %8 : vector<16x32xf32>
    %c0_9 = arith.constant 0 : index
    %c0_10 = arith.constant 0 : index
    %10 = vector.load %arg4[%c0_9, %c0_10] : memref<32x32xf32, #tpu.memory_space<vmem>>, vector<32x32xf32>
    %cst_11 = arith.constant dense<0.000000e+00> : vector<16x32xf32>
    %11 = tpu.matmul %9, %10, %cst_11 {dimension_numbers = #tpu.dot_dimension_numbers<[1], [0], [0], [1], [0, 0, 1, 1], [], []>} : vector<16x32xf32>, vector<32x32xf32>, vector<16x32xf32> -> vector<16x32xf32>
    %cst_12 = arith.constant dense<0.000000e+00> : vector<16x32xf32>
    %12 = tpu.matmul %0, %11, %cst_12 {dimension_numbers = #tpu.dot_dimension_numbers<[1], [0], [0], [1], [0, 0, 1, 1], [], []>} : vector<16x16xf32>, vector<16x32xf32>, vector<16x32xf32> -> vector<16x32xf32>
    %c0_13 = arith.constant 0 : index
    %c0_14 = arith.constant 0 : index
    %13 = vector.load %arg5[%c0_13, %c0_14] : memref<1x32xf32, #tpu.memory_space<vmem>>, vector<1x32xf32>
    %14 = vector.broadcast %13 : vector<1x32xf32> to vector<16x32xf32>
    %15 = arith.addf %12, %14 : vector<16x32xf32>
    %cst_15 = arith.constant 0.000000e+00 : f32
    %16 = vector.broadcast %cst_15 : f32 to vector<16x32xf32>
    %17 = arith.maximumf %15, %16 : vector<16x32xf32>
    %c0_16 = arith.constant 0 : index
    %c0_17 = arith.constant 0 : index
    %18 = vector.load %arg6[%c0_16, %c0_17] : memref<32x32xf32, #tpu.memory_space<vmem>>, vector<32x32xf32>
    %cst_18 = arith.constant dense<0.000000e+00> : vector<16x32xf32>
    %19 = tpu.matmul %17, %18, %cst_18 {dimension_numbers = #tpu.dot_dimension_numbers<[1], [0], [0], [1], [0, 0, 1, 1], [], []>} : vector<16x32xf32>, vector<32x32xf32>, vector<16x32xf32> -> vector<16x32xf32>
    %c0_19 = arith.constant 0 : index
    %c0_20 = arith.constant 0 : index
    %20 = vector.load %arg7[%c0_19, %c0_20] : memref<1x32xf32, #tpu.memory_space<vmem>>, vector<1x32xf32>
    %21 = vector.broadcast %20 : vector<1x32xf32> to vector<16x32xf32>
    %22 = arith.addf %19, %21 : vector<16x32xf32>
    %c0_21 = arith.constant 0 : index
    %c0_22 = arith.constant 0 : index
    %23 = vector.load %arg8[%c0_21, %c0_22] : memref<16x32xf32, #tpu.memory_space<vmem>>, vector<16x32xf32>
    tpu.vector_store %arg8[%c0_21, %c0_22], %22 {strides = array<i32>} : memref<16x32xf32, #tpu.memory_space<vmem>>, vector<16x32xf32>,
    return
  }
}

</mosaic_0001>

<llo_original>
// kernel: tpu_custom_call.1
$region0: #{tpu_custom_call.1}
  #allocation0 [shape = 'u32[]', space=smem, size = 0x4, offset = 0x4, fixed_abs, tag = 'smem constant byte address 0x4 - core index']
  #allocation1 [shape = 'u32[72,128]{1,0:T(1,128)}', space=vmem, size = 0x9000, scoped, tag = 'internal scratch']
  %s0 = inlined_call_operand.vmem [shape: f32[16,16], index: 0, kind: input, shape index: {}]
  %s1 = inlined_call_operand.vmem [shape: f32[16,8], index: 1, kind: input, shape index: {}]
  %s2 = inlined_call_operand.vmem [shape: f32[8,32], index: 2, kind: input, shape index: {}]
  %s3 = inlined_call_operand.vmem [shape: f32[1,32], index: 3, kind: input, shape index: {}]
  %s4 = inlined_call_operand.hbm [shape: f32[32,32], index: 4, kind: input, shape index: {}]
  %s5 = inlined_call_operand.vmem [shape: f32[1,32], index: 5, kind: input, shape index: {}]
  %s6 = inlined_call_operand.hbm [shape: f32[32,32], index: 6, kind: input, shape index: {}]
  %s7 = inlined_call_operand.vmem [shape: f32[1,32], index: 7, kind: input, shape index: {}]
  %s8 = inlined_call_operand.hbm [shape: f32[16,32], index: 8, kind: output, shape index: {}]
  %s9 = sld [smem:[#allocation0]]
  $region50: #{tpu_custom_call.1} parent=0
    _
  %s11 = ssub.s32 1, %s9
  %s12 = scalar_select 0, %s11, %s9
  $region1: #{tpu_custom_call.1} parent=0
    #allocation2 [shape = 'u8[16384]{0}', space=vmem, size = 0x4000, scoped, tag = 'input window, operand 4, single buffered']
    #allocation3 [shape = 's32[1]{0}', space=sflag, size = 0x4, scoped, tag = 'scoped memory for tpu_custom_call.1']
    #allocation4 [shape = 's32[1]{0}', space=sflag, size = 0x4, scoped, tag = 'scoped memory for tpu_custom_call.1']
    #allocation5 [shape = 'u8[16384]{0}', space=vmem, size = 0x4000, scoped, tag = 'input window, operand 6, single buffered']
    #allocation6 [shape = 's32[1]{0}', space=sflag, size = 0x4, scoped, tag = 'scoped memory for tpu_custom_call.1']
    #allocation7 [shape = 'u8[8192]{0}', space=vmem, size = 0x2000, scoped, tag = 'output window, operand 0, single buffered']
    %13 = vsyncpa [#allocation3], 0
    %14 = vsyncpa [#allocation6], 0
    %15 = vsyncpa [#allocation4], 0
    // Predicated region
    $region2: #{tpu_custom_call.1} parent=1 // pred_check
      _
    $region3: #{tpu_custom_call.1} parent=1 // pred_check_branch
      %17 = sbr.rel (0) target = $region5
    $region4: #{tpu_custom_call.1} parent=1 // pred_region
      _
    $region5: #{tpu_custom_call.1} parent=1 // pred_fallthru
      _
    // Predicated region
    $region6: #{tpu_custom_call.1} parent=1 // pred_check
      _
    $region7: #{tpu_custom_call.1} parent=1 // pred_check_branch
      %19 = sbr.rel (0) target = $region9
    $region8: #{tpu_custom_call.1} parent=1 // pred_region
      _
    $region9: #{tpu_custom_call.1} parent=1 // pred_fallthru
      _
    // Predicated region
    $region10: #{tpu_custom_call.1} parent=1 // pred_check
      _
    $region11: #{tpu_custom_call.1} parent=1 // pred_check_branch
      %21 = sbr.rel (0) target = $region13
    $region12: #{tpu_custom_call.1} parent=1 // pred_region
      _
    $region13: #{tpu_custom_call.1} parent=1 // pred_fallthru
      _
    // Predicated region
    $region14: #{tpu_custom_call.1} parent=1 // pred_check
      _
    $region15: #{tpu_custom_call.1} parent=1 // pred_check_branch
      %23 = sbr.rel (0) target = $region17
    $region16: #{tpu_custom_call.1} parent=1 // pred_region
      _
    $region17: #{tpu_custom_call.1} parent=1 // pred_fallthru
      _
    // Predicated region
    $region18: #{tpu_custom_call.1} parent=1 // pred_check
      _
    $region19: #{tpu_custom_call.1} parent=1 // pred_check_branch
      %25 = sbr.rel (0) target = $region21
    $region20: #{tpu_custom_call.1} parent=1 // pred_region
      %27 = vsyncadd [#allocation3], 0
      %s28 = sshll.u32 %s4, 4
      %s29 = int_to_ptr.hbm [resolvable:$true] %s28
      %s30 = sshll.u32 [#allocation2], 4
      %s31 = int_to_ptr.vmem [resolvable:$true] %s30
      %36 = dma.hbm_to_vmem [thread:$0]  %s29, 512, %s31, [#allocation3], 128, 128, 8
    $region21: #{tpu_custom_call.1} parent=1 // pred_fallthru
      _
    // Predicated region
    $region22: #{tpu_custom_call.1} parent=1 // pred_check
      _
    $region23: #{tpu_custom_call.1} parent=1 // pred_check_branch
      %38 = sbr.rel (0) target = $region25
    $region24: #{tpu_custom_call.1} parent=1 // pred_region
      _
    $region25: #{tpu_custom_call.1} parent=1 // pred_fallthru
      _
    // Predicated region
    $region26: #{tpu_custom_call.1} parent=1 // pred_check
      _
    $region27: #{tpu_custom_call.1} parent=1 // pred_check_branch
      %40 = sbr.rel (0) target = $region29
    $region28: #{tpu_custom_call.1} parent=1 // pred_region
      %42 = vsyncadd [#allocation6], 0
      %s43 = sshll.u32 %s6, 4
      %s44 = int_to_ptr.hbm [resolvable:$true] %s43
      %s45 = sshll.u32 [#allocation5], 4
      %s46 = int_to_ptr.vmem [resolvable:$true] %s45
      %51 = dma.hbm_to_vmem [thread:$0]  %s44, 512, %s46, [#allocation6], 128, 128, 8
    $region29: #{tpu_custom_call.1} parent=1 // pred_fallthru
      _
    // Predicated region
    $region30: #{tpu_custom_call.1} parent=1 // pred_check
      _
    $region31: #{tpu_custom_call.1} parent=1 // pred_check_branch
      %53 = sbr.rel (0) target = $region33
    $region32: #{tpu_custom_call.1} parent=1 // pred_region
      _
    $region33: #{tpu_custom_call.1} parent=1 // pred_fallthru
      _
    // Predicated region
    $region34: #{tpu_custom_call.1} parent=1 // pred_check
      _
    $region35: #{tpu_custom_call.1} parent=1 // pred_check_branch
      %55 = sbr.rel (0) target = $region37
    $region36: #{tpu_custom_call.1} parent=1 // pred_region
      %57 = dma.done [#allocation3], 512
    $region37: #{tpu_custom_call.1} parent=1 // pred_fallthru
      _
    // Predicated region
    $region38: #{tpu_custom_call.1} parent=1 // pred_check
      _
    $region39: #{tpu_custom_call.1} parent=1 // pred_check_branch
      %59 = sbr.rel (0) target = $region41
    $region40: #{tpu_custom_call.1} parent=1 // pred_region
      %61 = dma.done [#allocation6], 512
    $region41: #{tpu_custom_call.1} parent=1 // pred_fallthru
      _
    %v62 = vld [vmem:[%s0] sm:$0xff]
    %v63 = vld [vmem:[%s0 + $0x8] sm:$0xff]
    %v64 = vld [vmem:[%s1] sm:$0xff]
    %v65 = vld [vmem:[%s1 + $0x8] sm:$0xff]
    %v66 = vld [vmem:[%s2] sm:$0xff]
    %vm67 = vcmask 64512
    %v69 = vsel %vm67, %v64, 0
    %v72 = vsel %vm67, %v65, 0
    %74 = vmatpush.msra.mxu0 0.0
    %75 = vmatpush.msra.mxu0 0.0
    %76 = vmatpush.msra.mxu0 0.0
    %77 = vmatpush.msra.mxu0 0.0
    %78 = vmatpush.msra.mxu0 0.0
    %79 = vmatpush.msra.mxu0 0.0
    %80 = vmatpush.msra.mxu0 0.0
    %81 = vmatpush.msra.mxu0 0.0
    %82 = vmatpush.msra.mxu0 0.0
    %83 = vmatpush.msra.mxu0 0.0
    %84 = vmatpush.msra.mxu0 0.0
    %85 = vmatpush.msra.mxu0 0.0
    %86 = vmatpush.msra.mxu0 0.0
    %87 = vmatpush.msra.mxu0 0.0
    %88 = vmatpush.msra.mxu0 0.0
    %89 = vmatpush.msra.mxu0 %v66
    %90 = vmatmul.f32.gmra.mxu0 %v69
    %v91 = vpop.f32.mrf.mxu0
    %v92 = vadd.f32 0.0, %v91
    %93 = vmatmul.f32.gmra.mxu0 %v72
    %v94 = vpop.f32.mrf.mxu0
    %v95 = vadd.f32 0.0, %v94
    %96 = vdwg.mxu0
    %v97 = vld [vmem:[%s3] sm:$0x1]
    %v99 = vperm.slane %v97, 0
    %vm101 = vcmask 130048
    %v103 = vsel %vm101, %v62, 0
    %v106 = vsel %vm101, %v63, 0
    %108 = vmatpush.msra.mxu0 0.0
    %109 = vmatpush.msra.mxu0 0.0
    %110 = vmatpush.msra.mxu0 0.0
    %111 = vmatpush.msra.mxu0 0.0
    %112 = vmatpush.msra.mxu0 0.0
    %113 = vmatpush.msra.mxu0 0.0
    %114 = vmatpush.msra.mxu0 0.0
    %115 = vmatpush.msra.mxu0 0.0
    %116 = vmatpush.msra.mxu0 0.0
    %117 = vmatpush.msra.mxu0 0.0
    %118 = vmatpush.msra.mxu0 0.0
    %119 = vmatpush.msra.mxu0 0.0
    %120 = vmatpush.msra.mxu0 0.0
    %121 = vmatpush.msra.mxu0 0.0
    %122 = vmatpush.msra.mxu0 %v95
    %123 = vmatpush.msra.mxu0 %v92
    %124 = vmatmul.f32.gmra.mxu0 %v103
    %v125 = vpop.f32.mrf.mxu0
    %v126 = vadd.f32 %v99, %v125
    %127 = vmatmul.f32.gmra.mxu0 %v106
    %v128 = vpop.f32.mrf.mxu0
    %v129 = vadd.f32 %v99, %v128
    %130 = vdwg.mxu0
    %v131 = vmax.f32 %v126, 0.0
    %v132 = vmax.f32 %v129, 0.0
    %v133 = vld [vmem:[#allocation2] sm:$0xff]
    %v134 = vld [vmem:[#allocation2 + $0x8] sm:$0xff]
    %v135 = vld [vmem:[#allocation2 + $0x10] sm:$0xff]
    %v136 = vld [vmem:[#allocation2 + $0x18] sm:$0xff]
    %vm137 = vcmask 261120
    %v139 = vsel %vm137, %v131, 0
    %v142 = vsel %vm137, %v132, 0
    %144 = vmatpush.msra.mxu0 0.0
    %145 = vmatpush.msra.mxu0 0.0
    %146 = vmatpush.msra.mxu0 0.0
    %147 = vmatpush.msra.mxu0 0.0
    %148 = vmatpush.msra.mxu0 0.0
    %149 = vmatpush.msra.mxu0 0.0
    %150 = vmatpush.msra.mxu0 0.0
    %151 = vmatpush.msra.mxu0 0.0
    %152 = vmatpush.msra.mxu0 0.0
    %153 = vmatpush.msra.mxu0 0.0
    %154 = vmatpush.msra.mxu0 0.0
    %155 = vmatpush.msra.mxu0 0.0
    %156 = vmatpush.msra.mxu0 %v136
    %157 = vmatpush.msra.mxu0 %v135
    %158 = vmatpush.msra.mxu0 %v134
    %159 = vmatpush.msra.mxu0 %v133
    %160 = vmatmul.f32.gmra.mxu0 %v139
    %v161 = vpop.f32.mrf.mxu0
    %v162 = vadd.f32 0.0, %v161
    %163 = vmatmul.f32.gmra.mxu0 %v142
    %v164 = vpop.f32.mrf.mxu0
    %v165 = vadd.f32 0.0, %v164
    %166 = vdwg.mxu0
    %v167 = vld [vmem:[%s5] sm:$0x1]
    %v169 = vperm.slane %v167, 0
    %171 = vmatpush.msra.mxu0 0.0
    %172 = vmatpush.msra.mxu0 0.0
    %173 = vmatpush.msra.mxu0 0.0
    %174 = vmatpush.msra.mxu0 0.0
    %175 = vmatpush.msra.mxu0 0.0
    %176 = vmatpush.msra.mxu0 0.0
    %177 = vmatpush.msra.mxu0 0.0
    %178 = vmatpush.msra.mxu0 0.0
    %179 = vmatpush.msra.mxu0 0.0
    %180 = vmatpush.msra.mxu0 0.0
    %181 = vmatpush.msra.mxu0 0.0
    %182 = vmatpush.msra.mxu0 0.0
    %183 = vmatpush.msra.mxu0 0.0
    %184 = vmatpush.msra.mxu0 0.0
    %185 = vmatpush.msra.mxu0 %v165
    %186 = vmatpush.msra.mxu0 %v162
    %187 = vmatmul.f32.gmra.mxu0 %v103
    %v188 = vpop.f32.mrf.mxu0
    %v189 = vadd.f32 %v169, %v188
    %190 = vmatmul.f32.gmra.mxu0 %v106
    %v191 = vpop.f32.mrf.mxu0
    %v192 = vadd.f32 %v169, %v191
    %193 = vdwg.mxu0
    %v194 = vmax.f32 %v189, 0.0
    %v195 = vmax.f32 %v192, 0.0
    %v196 = vld [vmem:[#allocation5] sm:$0xff]
    %v197 = vld [vmem:[#allocation5 + $0x8] sm:$0xff]
    %v198 = vld [vmem:[#allocation5 + $0x10] sm:$0xff]
    %v199 = vld [vmem:[#allocation5 + $0x18] sm:$0xff]
    %v200 = vld [vmem:[%s7] sm:$0x1]
    %v202 = vperm.slane %v200, 0
    %v205 = vsel %vm137, %v194, 0
    %v208 = vsel %vm137, %v195, 0
    %210 = vmatpush.msra.mxu0 0.0
    %211 = vmatpush.msra.mxu0 0.0
    %212 = vmatpush.msra.mxu0 0.0
    %213 = vmatpush.msra.mxu0 0.0
    %214 = vmatpush.msra.mxu0 0.0
    %215 = vmatpush.msra.mxu0 0.0
    %216 = vmatpush.msra.mxu0 0.0
    %217 = vmatpush.msra.mxu0 0.0
    %218 = vmatpush.msra.mxu0 0.0
    %219 = vmatpush.msra.mxu0 0.0
    %220 = vmatpush.msra.mxu0 0.0
    %221 = vmatpush.msra.mxu0 0.0
    %222 = vmatpush.msra.mxu0 %v199
    %223 = vmatpush.msra.mxu0 %v198
    %224 = vmatpush.msra.mxu0 %v197
    %225 = vmatpush.msra.mxu0 %v196
    %226 = vmatmul.f32.gmra.mxu0 %v205
    %v227 = vpop.f32.mrf.mxu0
    %v228 = vadd.f32 %v202, %v227
    %229 = vmatmul.f32.gmra.mxu0 %v208
    %v230 = vpop.f32.mrf.mxu0
    %v231 = vadd.f32 %v202, %v230
    %232 = vdwg.mxu0
    %233 = vst.msk [vmem:[#allocation7] sm:$0xff] %vm137, %v228
    %234 = vst.msk [vmem:[#allocation7 + $0x8] sm:$0xff] %vm137, %v231
    // Predicated region
    $region42: #{tpu_custom_call.1} parent=1 // pred_check
      _
    $region43: #{tpu_custom_call.1} parent=1 // pred_check_branch
      %236 = sbr.rel (0) target = $region45
    $region44: #{tpu_custom_call.1} parent=1 // pred_region
      %238 = vsyncadd [#allocation4], 0
      %s239 = sshll.u32 [#allocation7], 4
      %s240 = int_to_ptr.vmem [resolvable:$true] %s239
      %s241 = sshll.u32 %s8, 4
      %s242 = int_to_ptr.hbm [resolvable:$true] %s241
      %247 = dma.vmem_to_hbm [thread:$0]  %s240, 256, %s242, [#allocation4], 128, 128, 8
    $region45: #{tpu_custom_call.1} parent=1 // pred_fallthru
      _
    // Predicated region
    $region46: #{tpu_custom_call.1} parent=1 // pred_check
      _
    $region47: #{tpu_custom_call.1} parent=1 // pred_check_branch
      %249 = sbr.rel (0) target = $region49
    $region48: #{tpu_custom_call.1} parent=1 // pred_region
      %251 = dma.done [#allocation4], 256
    $region49: #{tpu_custom_call.1} parent=1 // pred_fallthru
      _
    %252 = vsyncpa [#allocation3], 1
    %253 = vsyncpa [#allocation6], 1
    %254 = vsyncpa [#allocation4], 1

</llo_original>
